<compile_context>
chip_gen: v6e
topology: v6e:2x2x1
jax: 0.10.0
libtpu: 0.0.40
codegen_flags: <defaults>
</compile_context>

<pallas_src>
import functools

import jax
import jax.numpy as jnp
import numpy as np
from jax.experimental import pallas as pl
from jax.experimental.pallas import tpu as pltpu


_INV_SQRT2 = np.float32(0.7071067811865476)
_GELU_TANH_APPROX = False   # keep exact erf to match torch.nn.GELU() default


# ----------------------------- in-kernel math helpers -----------------------------

def _gelu(x):
    if _GELU_TANH_APPROX:
        # tanh approximation runs on the EUP slot (v6e/v7x VALU relief); numerics
        # differ slightly from exact GELU, so it is off by default.
        return jax.nn.gelu(x, approximate=True)
    return 0.5 * x * (1.0 + jax.lax.erf(x * _INV_SQRT2))


def _layernorm(x, gamma, beta, eps=1e-5):
    mu = jnp.mean(x, axis=-1, keepdims=True)
    var = jnp.mean((x - mu) ** 2, axis=-1, keepdims=True)
    return (x - mu) * jax.lax.rsqrt(var + eps) * gamma + beta


# --------------------------- generation-aware sizing -------------------------------

def _round_up(x, m):
    return ((x + m - 1) // m) * m


@functools.lru_cache(maxsize=None)
def _vmem_limit_and_budget():
    """(vmem_limit_bytes for CompilerParams, planning budget for our buffers)."""
    cap = 64 * 1024 * 1024                      # conservative default (v7x per-TC)
    try:
        info = pltpu.get_tpu_info()
        c = getattr(info, "vmem_capacity_bytes", None)
        if c:
            cap = int(c)
    except Exception:
        pass
    # Leave headroom for Mosaic internal scratch; never request more than 112 MiB.
    limit = max(min(cap - 8 * 1024 * 1024, 112 * 1024 * 1024), 32 * 1024 * 1024)
    budget = int(limit * 0.85)
    return limit, budget


def _batch_tile(B):
    # Weight-streaming arithmetic intensity is ~2*tm FLOP per weight byte; a
    # 256-row M-tile keeps all generations compute-bound and fills the 256-wide
    # MXU on v6e/v7x.  Small batches: one whole-(padded)-batch tile.
    if B >= 256:
        return 256
    return _round_up(B, 8)


def _pick_hidden_tile(H, tm, budget_bytes):
    """Largest hidden tile tn (divisor of H) whose per-step VMEM fits the budget."""
    assert H % 128 == 0, "hidden dim must be a multiple of 128 (lane width)"
    # Fixed per-call VMEM: x in/out blocks (bf16, double-buffered) = 8*tm*H,
    # plus scratches x_res(f32) + x_bf16(bf16) + acc(f32) = 10*tm*H.
    fixed = 18 * tm * H
    for t in (2048, 1024, 512, 256, 128):
        if H % t == 0 and fixed + 8 * t * H <= budget_bytes:
            # 8*t*H = W1 tile + W2 tile, bf16, each double-buffered.
            return t
    return 128


# --------------------------------- Pallas kernels ---------------------------------

def _mlp_stack_kernel(x_ref, w1_ref, b1_ref, w2_ref, b2_ref, o_ref,
                      x_res, x_bf16, acc):
    """Fused residual MLP stack.

    Grid = (i: batch tile [parallel], l: block [arbitrary], j: hidden tile [arbitrary]).
    x_res (f32) holds the activation for the whole stack; x_bf16 is its bf16
    copy refreshed once per block; acc (f32) accumulates matmul-2 over j.
    Per block l:  x <- x + Linear2(GELU(Linear1(x)))   (dropout = identity).
    """
    l = pl.program_id(1)
    j = pl.program_id(2)
    nl = pl.num_programs(1)
    nj = pl.num_programs(2)

    @pl.when(jnp.logical_and(l == 0, j == 0))
    def _():
        x_res[...] = x_ref[...].astype(jnp.float32)

    # bf16 copy of the resident activation, refreshed once per residual block.
    @pl.when(j == 0)
    def _():
        x_bf16[...] = x_res[...].astype(jnp.bfloat16)

    # matmul 1 (N-tiled): (tm, H) @ (H, tn) -> (tm, tn) preactivation
    h = jnp.dot(x_bf16[...], w1_ref[0, 0],
                preferred_element_type=jnp.float32) + b1_ref[0]
    h = _gelu(h)
    # matmul 2 (K-tiled): (tm, tn) @ (tn, H), accumulated over j.
    contrib = jnp.dot(h.astype(w2_ref.dtype), w2_ref[0],
                      preferred_element_type=jnp.float32)

    @pl.when(j == 0)
    def _():
        acc[...] = contrib            # assign on first tile (no zero-fill pass)

    @pl.when(j > 0)
    def _():
        acc[...] = acc[...] + contrib

    @pl.when(j == nj - 1)
    def _():
        x_res[...] = x_res[...] + acc[...] + b2_ref[0]   # residual update

    @pl.when(jnp.logical_and(l == nl - 1, j == nj - 1))
    def _():
        o_ref[...] = x_res[...].astype(o_ref.dtype)


def _tail_kernel(x_ref, lw_ref, lb_ref,
                 g0_ref, be0_ref, w1_ref, b1_ref,
                 g1_ref, be1_ref, w2_ref, b2_ref,
                 g2_ref, be2_ref, w3_ref, b3_ref,
                 bb_ref, proj_ref):
    """Fused lin1 + clip_proj.  Backbone intermediate stays in VMEM/registers."""
    bb = jnp.dot(x_ref[...], lw_ref[...],
                 preferred_element_type=jnp.float32) + lb_ref[...]
    bb_ref[...] = bb.astype(bb_ref.dtype)

    tm, out_dim = bb.shape
    clip = g0_ref.shape[-1]
    h = bb.reshape(tm * (out_dim // clip), clip)          # (B, n_tok, clip) tokens

    h = _gelu(_layernorm(h, g0_ref[...], be0_ref[...]))
    h = jnp.dot(h.astype(w1_ref.dtype), w1_ref[...],
                preferred_element_type=jnp.float32) + b1_ref[...]
    h = _gelu(_layernorm(h, g1_ref[...], be1_ref[...]))
    h = jnp.dot(h.astype(w2_ref.dtype), w2_ref[...],
                preferred_element_type=jnp.float32) + b2_ref[...]
    h = _gelu(_layernorm(h, g2_ref[...], be2_ref[...]))
    h = jnp.dot(h.astype(w3_ref.dtype), w3_ref[...],
                preferred_element_type=jnp.float32) + b3_ref[...]
    proj_ref[...] = h.astype(proj_ref.dtype)


# --------------------------------- wrappers ---------------------------------------

def _full_spec(shape):
    return pl.BlockSpec(shape, lambda i: (0,) * len(shape))


def mlp_stack(x, W1s, B1s, W2s, B2s, tm, tn):
    B, H = x.shape
    n_blocks = W1s.shape[0]
    nj = H // tn
    grid = (B // tm, n_blocks, nj)
    vmem_limit, _ = _vmem_limit_and_budget()
    n_batch_tiles = B // tm
    cost = pl.CostEstimate(
        flops=int(4 * B * H * H * n_blocks),
        transcendentals=int(B * H * n_blocks),
        bytes_accessed=int(n_batch_tiles * n_blocks * 2 * H * H * 2   # streamed weights
                           + 2 * B * H * 2),                          # x in + out (bf16)
    )
    return pl.pallas_call(
        _mlp_stack_kernel,
        out_shape=jax.ShapeDtypeStruct((B, H), jnp.bfloat16),
        grid=grid,
        in_specs=[
            pl.BlockSpec((tm, H), lambda i, l, j: (i, 0)),
            # W1 pre-tiled (n_blocks, nj, H, tn): each streamed slab is contiguous.
            pl.BlockSpec((1, 1, H, tn), lambda i, l, j: (l, j, 0, 0)),
            pl.BlockSpec((1, 1, tn), lambda i, l, j: (l, 0, j)),
            pl.BlockSpec((1, tn, H), lambda i, l, j: (l, j, 0)),
            pl.BlockSpec((1, 1, H), lambda i, l, j: (l, 0, 0)),
        ],
        out_specs=pl.BlockSpec((tm, H), lambda i, l, j: (i, 0)),
        scratch_shapes=[pltpu.VMEM((tm, H), jnp.float32),    # resident f32 activation
                        pltpu.VMEM((tm, H), jnp.bfloat16),   # bf16 LHS for matmul-1
                        pltpu.VMEM((tm, H), jnp.float32)],   # matmul-2 accumulator
        compiler_params=pltpu.CompilerParams(
            dimension_semantics=("parallel", "arbitrary", "arbitrary"),
            vmem_limit_bytes=vmem_limit),
        cost_estimate=cost,
    )(x, W1s, B1s, W2s, B2s)


def lin1_and_projector(x, lin1, proj, tm):
    B, H = x.shape
    lw, lb = lin1
    out_dim = lw.shape[1]
    clip = proj["g0"].shape[-1]
    ph = proj["w1"].shape[1]
    n_tok = out_dim // clip
    vmem_limit, _ = _vmem_limit_and_budget()
    args = (x, lw, lb,
            proj["g0"], proj["be0"], proj["w1"], proj["b1"],
            proj["g1"], proj["be1"], proj["w2"], proj["b2"],
            proj["g2"], proj["be2"], proj["w3"], proj["b3"])
    in_specs = [pl.BlockSpec((tm, H), lambda i: (i, 0))]
    in_specs += [_full_spec(a.shape) for a in args[1:]]
    out_specs = [pl.BlockSpec((tm, out_dim), lambda i: (i, 0)),
                 pl.BlockSpec((tm * n_tok, clip), lambda i: (i, 0))]
    cost = pl.CostEstimate(
        flops=int(2 * B * H * out_dim
                  + 2 * B * n_tok * (clip * ph + ph * ph + ph * clip)),
        transcendentals=int(B * n_tok * (clip + 2 * ph)),
        bytes_accessed=int(2 * (H * out_dim + clip * ph + ph * ph + ph * clip)
                           + B * H * 2 + 2 * B * out_dim * 2),
    )
    return pl.pallas_call(
        _tail_kernel,
        out_shape=(jax.ShapeDtypeStruct((B, out_dim), jnp.bfloat16),
                   jax.ShapeDtypeStruct((B * n_tok, clip), jnp.bfloat16)),
        grid=(B // tm,),
        in_specs=in_specs,
        out_specs=out_specs,
        compiler_params=pltpu.CompilerParams(
            dimension_semantics=("parallel",),
            vmem_limit_bytes=vmem_limit),
        cost_estimate=cost,
    )(*args)


# ------------------------------ parameter init ------------------------------------

def _linear_init(key, din, dout, scale=0.02):
    kw, kb = jax.random.split(key)
    w = (scale * jax.random.normal(kw, (din, dout), dtype=jnp.float32)).astype(jnp.bfloat16)
    b = (scale * jax.random.normal(kb, (1, dout), dtype=jnp.float32))
    return w, b


def _ln_init(key, d):
    kg, kb = jax.random.split(key)
    g = (1.0 + 0.05 * jax.random.normal(kg, (1, d), dtype=jnp.float32))
    b = (0.05 * jax.random.normal(kb, (1, d), dtype=jnp.float32))
    return g, b


def init_brain_network(key, h, out_dim, clip_size, proj_hidden, n_blocks):
    assert h % 128 == 0, "h must be a multiple of 128"
    assert out_dim % clip_size == 0, "out_dim must be a multiple of clip_size"
    _, budget = _vmem_limit_and_budget()
    tn = _pick_hidden_tile(h, 256, budget)   # plan for the largest batch tile
    nj = h // tn

    keys = jax.random.split(key, 2 * n_blocks + 7)
    w1s, b1s, w2s, b2s = [], [], [], []
    for i in range(n_blocks):
        w1, b1 = _linear_init(keys[2 * i], h, h)
        w2, b2 = _linear_init(keys[2 * i + 1], h, h)
        w1s.append(w1), b1s.append(b1), w2s.append(w2), b2s.append(b2)
    # Pre-tile W1 so every (h, tn) column slab is contiguous in HBM.
    W1s = jnp.stack(w1s).reshape(n_blocks, h, nj, tn).transpose(0, 2, 1, 3)
    B1s = jnp.stack(b1s)                                   # (n_blocks, 1, h)
    W2s = jnp.stack(w2s)                                   # (n_blocks, h, h)
    B2s = jnp.stack(b2s)

    lw, lb = _linear_init(keys[2 * n_blocks], h, out_dim)
    k = 2 * n_blocks + 1
    g0, be0 = _ln_init(keys[k + 0], clip_size)
    w1p, b1p = _linear_init(keys[k + 1], clip_size, proj_hidden)
    g1, be1 = _ln_init(keys[k + 2], proj_hidden)
    w2p, b2p = _linear_init(keys[k + 3], proj_hidden, proj_hidden)
    g2, be2 = _ln_init(keys[k + 4], proj_hidden)
    w3p, b3p = _linear_init(keys[k + 5], proj_hidden, clip_size)
    proj = dict(g0=g0, be0=be0, w1=w1p, b1=b1p, g1=g1, be1=be1,
                w2=w2p, b2=b2p, g2=g2, be2=be2, w3=w3p, b3=b3p)
    return dict(W1s=W1s, B1s=B1s, W2s=W2s, B2s=B2s, tn=tn,
                lin1=(lw, lb), proj=proj,
                clip_size=clip_size, use_projector=True)


# ------------------------------ forward (glue in JAX) ------------------------------

def brain_network_forward(x, params):
    B, H = x.shape
    x = x.astype(jnp.bfloat16)

    tm = _batch_tile(B)
    B_pad = _round_up(B, tm)
    if B_pad != B:
        x = jnp.pad(x, ((0, B_pad - B), (0, 0)))
    tn = params["tn"]

    y = mlp_stack(x, params["W1s"], params["B1s"], params["W2s"], params["B2s"],
                  tm, tn)
    backbone, proj = lin1_and_projector(y, params["lin1"], params["proj"], tm)

    out_dim = backbone.shape[1]
    clip = params["clip_size"]
    n_tok = out_dim // clip
    backbone = backbone[:B]
    if not params["use_projector"]:
        return backbone
    proj = proj.reshape(B_pad, n_tok, clip)[:B]
    return backbone, proj


# ------------------------------ pure-JAX reference ---------------------------------

def _ref_forward(x, params):
    def gelu(v):
        return 0.5 * v * (1.0 + jax.lax.erf(v * _INV_SQRT2))

    def ln(v, g, b):
        mu = jnp.mean(v, -1, keepdims=True)
        var = jnp.mean((v - mu) ** 2, -1, keepdims=True)
        return (v - mu) * jax.lax.rsqrt(var + 1e-5) * g + b

    def bdot(a, b):   # bf16 MXU inputs, f32 accumulation (mirrors the kernels)
        return jnp.dot(a.astype(jnp.bfloat16), b.astype(jnp.bfloat16),
                       preferred_element_type=jnp.float32)

    h = x.astype(jnp.bfloat16).astype(jnp.float32)
    n_blocks, nj, H, tn = params["W1s"].shape
    for l in range(n_blocks):
        w1 = params["W1s"][l].transpose(1, 0, 2).reshape(H, nj * tn)  # un-tile
        t = gelu(bdot(h, w1) + params["B1s"][l])
        h = h + bdot(t, params["W2s"][l]) + params["B2s"][l]
    y = h.astype(jnp.bfloat16)                      # HBM round trip between kernels

    lw, lb = params["lin1"]
    bb = bdot(y, lw) + lb
    p = params["proj"]
    clip = params["clip_size"]
    B = bb.shape[0]
    t = bb.reshape(B * (bb.shape[1] // clip), clip)
    t = gelu(ln(t, p["g0"], p["be0"]))
    t = bdot(t, p["w1"]) + p["b1"]
    t = gelu(ln(t, p["g1"], p["be1"]))
    t = bdot(t, p["w2"]) + p["b2"]
    t = gelu(ln(t, p["g2"], p["be2"]))
    t = bdot(t, p["w3"]) + p["b3"]
    return bb, t.reshape(B, -1, clip)


# ----------------------------------- main ------------------------------------------

if __name__ == "__main__":
    # Small shapes consistent with the module (original: h=4096, out_dim=clip_size=768,
    # projector hidden 2048).  Scaled down, keeping out_dim a multiple of clip_size.
    B, H, OUT_DIM, CLIP_SIZE, PROJ_H, N_BLOCKS = 12, 256, 128, 128, 256, 2

    key = jax.random.PRNGKey(0)
    kx, kp = jax.random.split(key)
    x = jax.random.normal(kx, (B, H), dtype=jnp.float32)
    params = init_brain_network(kp, H, OUT_DIM, CLIP_SIZE, PROJ_H, N_BLOCKS)

    backbone, clip = brain_network_forward(x, params)
    backbone = jax.block_until_ready(backbone)
    clip = jax.block_until_ready(clip)

    ref_backbone, ref_clip = _ref_forward(x, params)
    assert backbone.shape == (B, OUT_DIM)
    assert clip.shape == (B, OUT_DIM // CLIP_SIZE, CLIP_SIZE)
    np.testing.assert_allclose(np.asarray(backbone, dtype=np.float32),
                               np.asarray(ref_backbone, dtype=np.float32),
                               rtol=2e-2, atol=2e-2)
    np.testing.assert_allclose(np.asarray(clip, dtype=np.float32),
                               np.asarray(ref_clip, dtype=np.float32),
                               rtol=2e-2, atol=2e-2)
    print("KERNEL_OK")
</pallas_src>

<mosaic_0001>
module attributes {stable_mosaic.version = 11 : i64} {
  func.func @_mlp_stack_kernel(%arg0: i32, %arg1: i32, %arg2: i32, %arg3: memref<16x256xbf16, #tpu.memory_space<vmem>>, %arg4: memref<1x1x256x256xbf16, #tpu.memory_space<vmem>>, %arg5: memref<1x1x256xf32, #tpu.memory_space<vmem>>, %arg6: memref<1x256x256xbf16, #tpu.memory_space<vmem>>, %arg7: memref<1x1x256xf32, #tpu.memory_space<vmem>>, %arg8: memref<16x256xbf16, #tpu.memory_space<vmem>>, %arg9: memref<16x256xf32, #tpu.memory_space<vmem>>, %arg10: memref<16x256xbf16, #tpu.memory_space<vmem>>, %arg11: memref<16x256xf32, #tpu.memory_space<vmem>>) attributes {dimension_semantics = [#tpu.dimension_semantics<parallel>, #tpu.dimension_semantics<arbitrary>, #tpu.dimension_semantics<arbitrary>], iteration_bounds = array<i64: 1, 2, 1>, scalar_prefetch = 0 : i64, scratch_operands = 3 : i64, tpu.core_type = #tpu.core_type<tc>, window_params = [{transform_indices = @transform_0, window_bounds = array<i64: 16, 256>}, {transform_indices = @transform_1, window_bounds = array<i64: 1, 1, 256, 256>}, {transform_indices = @transform_2, window_bounds = array<i64: 1, 1, 256>}, {transform_indices = @transform_3, window_bounds = array<i64: 1, 256, 256>}, {transform_indices = @transform_4, window_bounds = array<i64: 1, 1, 256>}, {transform_indices = @transform_5, window_bounds = array<i64: 16, 256>}]} {
    %c0_i32 = arith.constant 0 : i32
    %0 = arith.cmpi eq, %arg1, %c0_i32 : i32
    %c0_i32_0 = arith.constant 0 : i32
    %1 = arith.cmpi eq, %arg2, %c0_i32_0 : i32
    %2 = arith.andi %0, %1 : i1
    %3 = arith.extui %2 : i1 to i32
    %c0_i32_1 = arith.constant 0 : i32
    %4 = arith.cmpi ne, %3, %c0_i32_1 : i32
    scf.if %4 {
      %c0_27 = arith.constant 0 : index
      %c0_28 = arith.constant 0 : index
      %42 = vector.load %arg3[%c0_27, %c0_28] : memref<16x256xbf16, #tpu.memory_space<vmem>>, vector<16x256xbf16>
      %43 = arith.extf %42 : vector<16x256xbf16> to vector<16x256xf32>
      %c0_29 = arith.constant 0 : index
      %c0_30 = arith.constant 0 : index
      %44 = vector.load %arg9[%c0_29, %c0_30] : memref<16x256xf32, #tpu.memory_space<vmem>>, vector<16x256xf32>
      tpu.vector_store %arg9[%c0_29, %c0_30], %43 {strides = array<i32>} : memref<16x256xf32, #tpu.memory_space<vmem>>, vector<16x256xf32>,
    } else {
    }
    %c0_i32_2 = arith.constant 0 : i32
    %5 = arith.cmpi eq, %arg2, %c0_i32_2 : i32
    %6 = arith.extui %5 : i1 to i32
    %c0_i32_3 = arith.constant 0 : i32
    %7 = arith.cmpi ne, %6, %c0_i32_3 : i32
    scf.if %7 {
      %c0_27 = arith.constant 0 : index
      %c0_28 = arith.constant 0 : index
      %42 = vector.load %arg9[%c0_27, %c0_28] : memref<16x256xf32, #tpu.memory_space<vmem>>, vector<16x256xf32>
      %43 = arith.truncf %42 : vector<16x256xf32> to vector<16x256xbf16>
      %c0_29 = arith.constant 0 : index
      %c0_30 = arith.constant 0 : index
      %44 = vector.load %arg10[%c0_29, %c0_30] : memref<16x256xbf16, #tpu.memory_space<vmem>>, vector<16x256xbf16>
      tpu.vector_store %arg10[%c0_29, %c0_30], %43 {strides = array<i32>} : memref<16x256xbf16, #tpu.memory_space<vmem>>, vector<16x256xbf16>,
    } else {
    }
    %c0 = arith.constant 0 : index
    %c0_4 = arith.constant 0 : index
    %8 = vector.load %arg10[%c0, %c0_4] : memref<16x256xbf16, #tpu.memory_space<vmem>>, vector<16x256xbf16>
    %c0_5 = arith.constant 0 : index
    %c0_6 = arith.constant 0 : index
    %c0_7 = arith.constant 0 : index
    %c0_8 = arith.constant 0 : index
    %9 = vector.load %arg4[%c0_5, %c0_6, %c0_7, %c0_8] : memref<1x1x256x256xbf16, #tpu.memory_space<vmem>>, vector<1x1x256x256xbf16>
    %10 = vector.shape_cast %9 : vector<1x1x256x256xbf16> to vector<256x256xbf16>
    %cst = arith.constant dense<0.000000e+00> : vector<16x256xf32>
    %11 = tpu.matmul %8, %10, %cst {dimension_numbers = #tpu.dot_dimension_numbers<[1], [0], [0], [1], [0, 0, 1, 1], [], []>} : vector<16x256xbf16>, vector<256x256xbf16>, vector<16x256xf32> -> vector<16x256xf32>
    %c0_9 = arith.constant 0 : index
    %c0_10 = arith.constant 0 : index
    %c0_11 = arith.constant 0 : index
    %12 = vector.load %arg5[%c0_9, %c0_10, %c0_11] : memref<1x1x256xf32, #tpu.memory_space<vmem>>, vector<1x1x256xf32>
    %13 = vector.shape_cast %12 : vector<1x1x256xf32> to vector<1x256xf32>
    %14 = vector.broadcast %13 : vector<1x256xf32> to vector<16x256xf32>
    %15 = arith.addf %11, %14 : vector<16x256xf32>
    %cst_12 = arith.constant 5.000000e-01 : f32
    %16 = vector.broadcast %cst_12 : f32 to vector<16x256xf32>
    %17 = arith.mulf %16, %15 : vector<16x256xf32>
    %cst_13 = arith.constant 0.707106769 : f32
    %18 = vector.broadcast %cst_13 : f32 to vector<16x256xf32>
    %19 = arith.mulf %15, %18 : vector<16x256xf32>
    %20 = math.erf %19 : vector<16x256xf32>
    %cst_14 = arith.constant 1.000000e+00 : f32
    %21 = vector.broadcast %cst_14 : f32 to vector<16x256xf32>
    %22 = arith.addf %21, %20 : vector<16x256xf32>
    %23 = arith.mulf %17, %22 : vector<16x256xf32>
    %24 = arith.truncf %23 : vector<16x256xf32> to vector<16x256xbf16>
    %c0_15 = arith.constant 0 : index
    %c0_16 = arith.constant 0 : index
    %c0_17 = arith.constant 0 : index
    %25 = vector.load %arg6[%c0_15, %c0_16, %c0_17] : memref<1x256x256xbf16, #tpu.memory_space<vmem>>, vector<1x256x256xbf16>
    %26 = vector.shape_cast %25 : vector<1x256x256xbf16> to vector<256x256xbf16>
    %cst_18 = arith.constant dense<0.000000e+00> : vector<16x256xf32>
    %27 = tpu.matmul %24, %26, %cst_18 {dimension_numbers = #tpu.dot_dimension_numbers<[1], [0], [0], [1], [0, 0, 1, 1], [], []>} : vector<16x256xbf16>, vector<256x256xbf16>, vector<16x256xf32> -> vector<16x256xf32>
    %c0_i32_19 = arith.constant 0 : i32
    %28 = arith.cmpi eq, %arg2, %c0_i32_19 : i32
    %29 = arith.extui %28 : i1 to i32
    %c0_i32_20 = arith.constant 0 : i32
    %30 = arith.cmpi ne, %29, %c0_i32_20 : i32
    scf.if %30 {
      %c0_27 = arith.constant 0 : index
      %c0_28 = arith.constant 0 : index
      %42 = vector.load %arg11[%c0_27, %c0_28] : memref<16x256xf32, #tpu.memory_space<vmem>>, vector<16x256xf32>
      tpu.vector_store %arg11[%c0_27, %c0_28], %27 {strides = array<i32>} : memref<16x256xf32, #tpu.memory_space<vmem>>, vector<16x256xf32>,
    } else {
    }
    %c0_i32_21 = arith.constant 0 : i32
    %31 = arith.cmpi sgt, %arg2, %c0_i32_21 : i32
    %32 = arith.extui %31 : i1 to i32
    %c0_i32_22 = arith.constant 0 : i32
    %33 = arith.cmpi ne, %32, %c0_i32_22 : i32
    scf.if %33 {
      %c0_27 = arith.constant 0 : index
      %c0_28 = arith.constant 0 : index
      %42 = vector.load %arg11[%c0_27, %c0_28] : memref<16x256xf32, #tpu.memory_space<vmem>>, vector<16x256xf32>
      %43 = arith.addf %42, %27 : vector<16x256xf32>
      %c0_29 = arith.constant 0 : index
      %c0_30 = arith.constant 0 : index
      %44 = vector.load %arg11[%c0_29, %c0_30] : memref<16x256xf32, #tpu.memory_space<vmem>>, vector<16x256xf32>
      tpu.vector_store %arg11[%c0_29, %c0_30], %43 {strides = array<i32>} : memref<16x256xf32, #tpu.memory_space<vmem>>, vector<16x256xf32>,
    } else {
    }
    %c0_i32_23 = arith.constant 0 : i32
    %34 = arith.cmpi eq, %arg2, %c0_i32_23 : i32
    %35 = arith.extui %34 : i1 to i32
    %c0_i32_24 = arith.constant 0 : i32
    %36 = arith.cmpi ne, %35, %c0_i32_24 : i32
    scf.if %36 {
      %c0_27 = arith.constant 0 : index
      %c0_28 = arith.constant 0 : index
      %42 = vector.load %arg9[%c0_27, %c0_28] : memref<16x256xf32, #tpu.memory_space<vmem>>, vector<16x256xf32>
      %c0_29 = arith.constant 0 : index
      %c0_30 = arith.constant 0 : index
      %43 = vector.load %arg11[%c0_29, %c0_30] : memref<16x256xf32, #tpu.memory_space<vmem>>, vector<16x256xf32>
      %44 = arith.addf %42, %43 : vector<16x256xf32>
      %c0_31 = arith.constant 0 : index
      %c0_32 = arith.constant 0 : index
      %c0_33 = arith.constant 0 : index
      %45 = vector.load %arg7[%c0_31, %c0_32, %c0_33] : memref<1x1x256xf32, #tpu.memory_space<vmem>>, vector<1x1x256xf32>
      %46 = vector.shape_cast %45 : vector<1x1x256xf32> to vector<1x256xf32>
      %47 = vector.broadcast %46 : vector<1x256xf32> to vector<16x256xf32>
      %48 = arith.addf %44, %47 : vector<16x256xf32>
      %c0_34 = arith.constant 0 : index
      %c0_35 = arith.constant 0 : index
      %49 = vector.load %arg9[%c0_34, %c0_35] : memref<16x256xf32, #tpu.memory_space<vmem>>, vector<16x256xf32>
      tpu.vector_store %arg9[%c0_34, %c0_35], %48 {strides = array<i32>} : memref<16x256xf32, #tpu.memory_space<vmem>>, vector<16x256xf32>,
    } else {
    }
    %c1_i32 = arith.constant 1 : i32
    %37 = arith.cmpi eq, %arg1, %c1_i32 : i32
    %c0_i32_25 = arith.constant 0 : i32
    %38 = arith.cmpi eq, %arg2, %c0_i32_25 : i32
    %39 = arith.andi %37, %38 : i1
    %40 = arith.extui %39 : i1 to i32
    %c0_i32_26 = arith.constant 0 : i32
    %41 = arith.cmpi ne, %40, %c0_i32_26 : i32
    scf.if %41 {
      %c0_27 = arith.constant 0 : index
      %c0_28 = arith.constant 0 : index
      %42 = vector.load %arg9[%c0_27, %c0_28] : memref<16x256xf32, #tpu.memory_space<vmem>>, vector<16x256xf32>
      %43 = arith.truncf %42 : vector<16x256xf32> to vector<16x256xbf16>
      %c0_29 = arith.constant 0 : index
      %c0_30 = arith.constant 0 : index
      %44 = vector.load %arg8[%c0_29, %c0_30] : memref<16x256xbf16, #tpu.memory_space<vmem>>, vector<16x256xbf16>
      tpu.vector_store %arg8[%c0_29, %c0_30], %43 {strides = array<i32>} : memref<16x256xbf16, #tpu.memory_space<vmem>>, vector<16x256xbf16>,
    } else {
    }
    return
  }
  func.func @transform_0(%arg0: i32, %arg1: i32, %arg2: i32) -> (i32, i32) {
    %c0_i32 = arith.constant 0 : i32
    %c0_i32_0 = arith.constant 0 : i32
    return %arg0, %c0_i32 : i32, i32
  }
  func.func @transform_1(%arg0: i32, %arg1: i32, %arg2: i32) -> (i32, i32, i32, i32) {
    %c0_i32 = arith.constant 0 : i32
    %c0_i32_0 = arith.constant 0 : i32
    %c0_i32_1 = arith.constant 0 : i32
    return %arg1, %arg2, %c0_i32, %c0_i32_0 : i32, i32, i32, i32
  }
  func.func @transform_2(%arg0: i32, %arg1: i32, %arg2: i32) -> (i32, i32, i32) {
    %c0_i32 = arith.constant 0 : i32
    %c0_i32_0 = arith.constant 0 : i32
    return %arg1, %c0_i32, %arg2 : i32, i32, i32
  }
  func.func @transform_3(%arg0: i32, %arg1: i32, %arg2: i32) -> (i32, i32, i32) {
    %c0_i32 = arith.constant 0 : i32
    %c0_i32_0 = arith.constant 0 : i32
    return %arg1, %arg2, %c0_i32 : i32, i32, i32
  }
  func.func @transform_4(%arg0: i32, %arg1: i32, %arg2: i32) -> (i32, i32, i32) {
    %c0_i32 = arith.constant 0 : i32
    %c0_i32_0 = arith.constant 0 : i32
    %c0_i32_1 = arith.constant 0 : i32
    return %arg1, %c0_i32, %c0_i32_0 : i32, i32, i32
  }
  func.func @transform_5(%arg0: i32, %arg1: i32, %arg2: i32) -> (i32, i32) {
    %c0_i32 = arith.constant 0 : i32
    %c0_i32_0 = arith.constant 0 : i32
    return %arg0, %c0_i32 : i32, i32
  }
}

</mosaic_0001>

<llo_original>
// kernel: tpu_custom_call.1
$region0: #{tpu_custom_call.1}
  #allocation0 [shape = 'u32[]', space=smem, size = 0x4, offset = 0x4, fixed_abs, tag = 'smem constant byte address 0x4 - core index']
  #allocation1 [shape = 'u32[144,128]{1,0:T(1,128)}', space=vmem, size = 0x12000, scoped, tag = 'internal scratch']
  #allocation2 [shape = 'f32[16,256]{1,0:T(8,128)}', space=vmem, size = 0x4000, scoped, tag = 'scratch operand']
  #allocation3 [shape = 'bf16[16,256]{1,0:T(8,128)(2,1)}', space=vmem, size = 0x2000, scoped, tag = 'scratch operand']
  #allocation4 [shape = 'f32[16,256]{1,0:T(8,128)}', space=vmem, size = 0x4000, scoped, tag = 'scratch operand']
  %s0 = inlined_call_operand.hbm [shape: bf16[16,256], index: 0, kind: input, shape index: {}]
  %s1 = inlined_call_operand.hbm [shape: bf16[2,1,256,256], index: 1, kind: input, shape index: {}]
  %s2 = inlined_call_operand.hbm [shape: f32[2,1,256], index: 2, kind: input, shape index: {}]
  %s3 = inlined_call_operand.hbm [shape: bf16[2,256,256], index: 3, kind: input, shape index: {}]
  %s4 = inlined_call_operand.vmem [shape: f32[2,1,256], index: 4, kind: input, shape index: {}]
  %s5 = inlined_call_operand.hbm [shape: bf16[16,256], index: 5, kind: output, shape index: {}]
  %s6 = sld [smem:[#allocation0]]
  $region93: #{tpu_custom_call.1} parent=0
    _
  %s8 = ssub.s32 1, %s6
  %s9 = scalar_select 0, %s8, %s6
  $region1: #{tpu_custom_call.1} parent=0
    #allocation5 [shape = 'u8[8192]{0}', space=vmem, size = 0x2000, scoped, tag = 'input window, operand 0, single buffered']
    #allocation6 [shape = 's32[2]{0}', space=sflag, size = 0x8, scoped, tag = 'scoped memory for tpu_custom_call.1']
    #allocation7 [shape = 's32[2]{0}', space=sflag, size = 0x8, scoped, tag = 'scoped memory for tpu_custom_call.1']
    #allocation8 [shape = 'u8[262144]{0}', space=vmem, size = 0x40000, scoped, tag = 'input window, operand 1']
    #allocation9 [shape = 's32[2]{0}', space=sflag, size = 0x8, scoped, tag = 'scoped memory for tpu_custom_call.1']
    #allocation10 [shape = 'u8[2048]{0}', space=vmem, size = 0x800, scoped, tag = 'input window, operand 2']
    #allocation11 [shape = 'u8[262144]{0}', space=vmem, size = 0x40000, scoped, tag = 'input window, operand 3']
    #allocation12 [shape = 's32[2]{0}', space=sflag, size = 0x8, scoped, tag = 'scoped memory for tpu_custom_call.1']
    #allocation13 [shape = 'u8[8192]{0}', space=vmem, size = 0x2000, scoped, tag = 'output window, operand 0, single buffered']
    %10 = vsyncpa [#allocation6], 0
    %11 = vsyncpa [#allocation9], 0
    %s12 = scalar_lea.sflag [#allocation9], 1
    %13 = vsyncpa %s12, 0
    %14 = vsyncpa [#allocation12], 0
    %s15 = scalar_lea.sflag [#allocation12], 1
    %16 = vsyncpa %s15, 0
    %17 = vsyncpa [#allocation7], 0
    loop: start=0, step=1, limit=4
    $region2: #{tpu_custom_call.1} parent=1 // loop_pre_header
      _
    $region3: #{tpu_custom_call.1} parent=1 // loop_header
      %s19 = sphi 0, %s23
      %p20 = scmp.ge.s32.totalorder %s19, 4
      %s26 = sphi 0, %s45
      %s27 = sphi 0, %s41
      %s28 = sphi 0, %s37
      %s29 = sphi 0, %s26
      %s30 = sphi 0, %s27
      %s31 = sphi 0, %s28
      %s32 = sphi 0, %s29
      %s33 = sphi 0, %s30
      %s34 = sphi 0, %s31
      %s48 = sphi 0, %s50
      %s51 = sphi 0, %s48
      %s52 = sphi 0, %s51
      %s68 = sphi 0, %s52
      %s76 = sphi 0, %s78
      %s79 = sphi 0, %s76
      %s80 = sphi 0, %s79
      %s96 = sphi 0, %s80
      %s104 = sphi 0, %s106
      %s107 = sphi 0, %s104
      %s108 = sphi 0, %s107
      %s124 = sphi 0, %s108
      %s132 = sphi 0, %s134
      %s135 = sphi 0, %s132
      %s136 = sphi 0, %s135
      %s152 = sphi 0, %s136
      %s158 = sphi 0, %s160
      %s161 = sphi 0, %s158
      %s162 = sphi 0, %s161
      %s178 = sphi 0, %s162
      %s184 = sphi 0, %s186
      %s187 = sphi 0, %s184
      %s188 = sphi 0, %s187
      %s204 = sphi 0, %s188
    $region4: #{tpu_custom_call.1} parent=1 // loop_header_branch
      %22 = sbr.rel (%p20) target = $region8
    $region5: #{tpu_custom_call.1} parent=1 // loop_body
      %s24 = ssub.s32 %s19, 1
      %s25 = ssub.s32 %s19, 2
      %s35 = sadd.s32 1, %s28
      %p36 = scmp.ge.s32.totalorder %s35, 1
      %s37 = scalar_select %p36, 0, %s35
      %s38 = sadd.s32 1, %s27
      %s39 = scalar_select %p36, %s38, %s27
      %p40 = scmp.ge.s32.totalorder %s39, 2
      %s41 = scalar_select %p40, 0, %s39
      %s42 = sadd.s32 1, %s26
      %s43 = scalar_select %p40, %s42, %s26
      %p44 = scmp.ge.s32.totalorder %s43, 1
      %s45 = scalar_select %p44, 0, %s43
      %s46 = ssub.s32 %s26, %s45
      %p47 = scmp.eq.s32.totalorder %s46, 0
      %s49 = sadd.s32 %s48, 1
      %s50 = scalar_select %p47, %s48, %s49
      %p53 = pneg %p47
      %p54 = scmp.eq.s32.totalorder %s19, 1
      %p55 = por %p53, %p54
      %p56 = scmp.ne.s32.totalorder %s48, %s51
      %p57 = scmp.eq.s32.totalorder %s19, 0
      %p58 = por %p56, %p57
      %p59 = scmp.ne.s32.totalorder %s48, %s51
      %p60 = scmp.eq.s32.totalorder %s24, 1
      %p61 = por %p59, %p60
      %p62 = scmp.ne.s32.totalorder %s51, %s52
      %p63 = scmp.eq.s32.totalorder %s24, 0
      %p64 = por %p62, %p63
      %p65 = scmp.ne.s32.totalorder %s51, %s52
      %p66 = scmp.eq.s32.totalorder %s25, 1
      %p67 = por %p65, %p66
      %p69 = scmp.ne.s32.totalorder %s52, %s68
      %p70 = scmp.eq.s32.totalorder %s25, 0
      %p71 = por %p69, %p70
      %s72 = ssub.s32 %s27, %s41
      %s73 = ssub.s32 %s28, %s37
      %s74 = sor.u32 %s72, %s73
      %p75 = scmp.eq.s32.totalorder %s74, 0
      %s77 = sadd.s32 %s76, 1
      %s78 = scalar_select %p75, %s76, %s77
      %p81 = pneg %p75
      %p82 = scmp.eq.s32.totalorder %s19, 1
      %p83 = por %p81, %p82
      %p84 = scmp.ne.s32.totalorder %s76, %s79
      %p85 = scmp.eq.s32.totalorder %s19, 0
      %p86 = por %p84, %p85
      %p87 = scmp.ne.s32.totalorder %s76, %s79
      %p88 = scmp.eq.s32.totalorder %s24, 1
      %p89 = por %p87, %p88
      %p90 = scmp.ne.s32.totalorder %s79, %s80
      %p91 = scmp.eq.s32.totalorder %s24, 0
      %p92 = por %p90, %p91
      %p93 = scmp.ne.s32.totalorder %s79, %s80
      %p94 = scmp.eq.s32.totalorder %s25, 1
      %p95 = por %p93, %p94
      %p97 = scmp.ne.s32.totalorder %s80, %s96
      %p98 = scmp.eq.s32.totalorder %s25, 0
      %p99 = por %p97, %p98
      %s100 = ssub.s32 %s27, %s41
      %s101 = ssub.s32 %s28, %s37
      %s102 = sor.u32 %s100, %s101
      %p103 = scmp.eq.s32.totalorder %s102, 0
      %s105 = sadd.s32 %s104, 1
      %s106 = scalar_select %p103, %s104, %s105
      %p109 = pneg %p103
      %p110 = scmp.eq.s32.totalorder %s19, 1
      %p111 = por %p109, %p110
      %p112 = scmp.ne.s32.totalorder %s104, %s107
      %p113 = scmp.eq.s32.totalorder %s19, 0
      %p114 = por %p112, %p113
      %p115 = scmp.ne.s32.totalorder %s104, %s107
      %p116 = scmp.eq.s32.totalorder %s24, 1
      %p117 = por %p115, %p116
      %p118 = scmp.ne.s32.totalorder %s107, %s108
      %p119 = scmp.eq.s32.totalorder %s24, 0
      %p120 = por %p118, %p119
      %p121 = scmp.ne.s32.totalorder %s107, %s108
      %p122 = scmp.eq.s32.totalorder %s25, 1
      %p123 = por %p121, %p122
      %p125 = scmp.ne.s32.totalorder %s108, %s124
      %p126 = scmp.eq.s32.totalorder %s25, 0
      %p127 = por %p125, %p126
      %s128 = ssub.s32 %s27, %s41
      %s129 = ssub.s32 %s28, %s37
      %s130 = sor.u32 %s128, %s129
      %p131 = scmp.eq.s32.totalorder %s130, 0
      %s133 = sadd.s32 %s132, 1
      %s134 = scalar_select %p131, %s132, %s133
      %p137 = pneg %p131
      %p138 = scmp.eq.s32.totalorder %s19, 1
      %p139 = por %p137, %p138
      %p140 = scmp.ne.s32.totalorder %s132, %s135
      %p141 = scmp.eq.s32.totalorder %s19, 0
      %p142 = por %p140, %p141
      %p143 = scmp.ne.s32.totalorder %s132, %s135
      %p144 = scmp.eq.s32.totalorder %s24, 1
      %p145 = por %p143, %p144
      %p146 = scmp.ne.s32.totalorder %s135, %s136
      %p147 = scmp.eq.s32.totalorder %s24, 0
      %p148 = por %p146, %p147
      %p149 = scmp.ne.s32.totalorder %s135, %s136
      %p150 = scmp.eq.s32.totalorder %s25, 1
      %p151 = por %p149, %p150
      %p153 = scmp.ne.s32.totalorder %s136, %s152
      %p154 = scmp.eq.s32.totalorder %s25, 0
      %p155 = por %p153, %p154
      %s156 = ssub.s32 %s27, %s41
      %p157 = scmp.eq.s32.totalorder %s156, 0
      %s159 = sadd.s32 %s158, 1
      %s160 = scalar_select %p157, %s158, %s159
      %p163 = pneg %p157
      %p164 = scmp.eq.s32.totalorder %s19, 1
      %p165 = por %p163, %p164
      %p166 = scmp.ne.s32.totalorder %s158, %s161
      %p167 = scmp.eq.s32.totalorder %s19, 0
      %p168 = por %p166, %p167
      %p169 = scmp.ne.s32.totalorder %s158, %s161
      %p170 = scmp.eq.s32.totalorder %s24, 1
      %p171 = por %p169, %p170
      %p172 = scmp.ne.s32.totalorder %s161, %s162
      %p173 = scmp.eq.s32.totalorder %s24, 0
      %p174 = por %p172, %p173
      %p175 = scmp.ne.s32.totalorder %s161, %s162
      %p176 = scmp.eq.s32.totalorder %s25, 1
      %p177 = por %p175, %p176
      %p179 = scmp.ne.s32.totalorder %s162, %s178
      %p180 = scmp.eq.s32.totalorder %s25, 0
      %p181 = por %p179, %p180
      %s182 = ssub.s32 %s26, %s45
      %p183 = scmp.eq.s32.totalorder %s182, 0
      %s185 = sadd.s32 %s184, 1
      %s186 = scalar_select %p183, %s184, %s185
      %p189 = pneg %p183
      %p190 = scmp.eq.s32.totalorder %s19, 1
      %p191 = por %p189, %p190
      %p192 = scmp.ne.s32.totalorder %s184, %s187
      %p193 = scmp.eq.s32.totalorder %s19, 0
      %p194 = por %p192, %p193
      %p195 = scmp.ne.s32.totalorder %s184, %s187
      %p196 = scmp.eq.s32.totalorder %s24, 1
      %p197 = por %p195, %p196
      %p198 = scmp.ne.s32.totalorder %s187, %s188
      %p199 = scmp.eq.s32.totalorder %s24, 0
      %p200 = por %p198, %p199
      %p201 = scmp.ne.s32.totalorder %s187, %s188
      %p202 = scmp.eq.s32.totalorder %s25, 1
      %p203 = por %p201, %p202
      %p205 = scmp.ne.s32.totalorder %s188, %s204
      %p206 = scmp.eq.s32.totalorder %s25, 0
      %p207 = por %p205, %p206
      %p208 = scmp.le.s32.totalorder 1, %s19
      %p209 = scmp.lt.s32.totalorder %s19, 3
      %p210 = pnand %p208, %p209
      %p211 = pneg %p210
      // Predicated region
      $region9: #{tpu_custom_call.1} parent=5 // pred_check
        _
      $region10: #{tpu_custom_call.1} parent=5 // pred_check_branch
        %213 = sbr.rel (%p210) target = $region12
      $region11: #{tpu_custom_call.1} parent=5 // pred_region
        %s214 = ssub.s32 %s19, 1
        // Predicated region
        $region13: #{tpu_custom_call.1} parent=11 // pred_check
          %p215 = pneg %p64
        $region14: #{tpu_custom_call.1} parent=11 // pred_check_branch
          %217 = sbr.rel (%p215) target = $region16
        $region15: #{tpu_custom_call.1} parent=11 // pred_region
          %s218 = smul.u32 2, %s29
          %s220 = ssub.s32 256, 256
          %221 = vsyncadd [#allocation6], %s220
          %s222 = smul.addr %s218, 2
          %s223 = smul.addr %s222, 64
          %s224 = scalar_lea.hbm %s0, %s223
          %s225 = sshll.u32 [#allocation5], 4
          %s226 = int_to_ptr.vmem [resolvable:$true] %s225
          %231 = dma.hbm_to_vmem [thread:$0]  %s224, 256, %s226, [#allocation6], 128, 128, 8
        $region16: #{tpu_custom_call.1} parent=11 // pred_fallthru
          _
      $region12: #{tpu_custom_call.1} parent=5 // pred_fallthru
        _
      %p232 = scmp.lt.s32.totalorder %s19, 2
      // Predicated region
      $region17: #{tpu_custom_call.1} parent=5 // pred_check
        %p233 = pneg %p232
      $region18: #{tpu_custom_call.1} parent=5 // pred_check_branch
        %235 = sbr.rel (%p233) target = $region20
      $region19: #{tpu_custom_call.1} parent=5 // pred_region
        // Predicated region
        $region21: #{tpu_custom_call.1} parent=19 // pred_check
          %p236 = pneg %p86
        $region22: #{tpu_custom_call.1} parent=19 // pred_check_branch
          %238 = sbr.rel (%p236) target = $region24
        $region23: #{tpu_custom_call.1} parent=19 // pred_region
          %s239 = sand.u32 %s19, 1
          %s240 = scalar_lea.sflag [#allocation9], %s239
          %s241 = sand.u32 %s76, 1
          %s242 = smul.addr %s241, 256
          %s243 = scalar_lea.vmem [#allocation8], %s242
          %s245 = ssub.s32 4096, 4096
          %246 = vsyncadd %s240, %s245
          %s247 = smul.addr %s28, 64
          %s248 = smul.addr %s27, 64
          %s249 = sadd.s32 %s247, %s248
          %s250 = smul.addr %s249, 64
          %s251 = scalar_lea.hbm %s1, %s250
          %s252 = sshll.u32 %s243, 4
          %s253 = int_to_ptr.vmem [resolvable:$true] %s252
          %258 = dma.hbm_to_vmem [thread:$0]  %s251, 4096, %s253, %s240, 128, 128, 8
        $region24: #{tpu_custom_call.1} parent=19 // pred_fallthru
          _
        // Predicated region
        $region25: #{tpu_custom_call.1} parent=19 // pred_check
          %p259 = pneg %p114
        $region26: #{tpu_custom_call.1} parent=19 // pred_check_branch
          %261 = sbr.rel (%p259) target = $region28
        $region27: #{tpu_custom_call.1} parent=19 // pred_region
          %s262 = sand.u32 %s19, 1
          %s263 = scalar_lea.sflag [#allocation9], %s262
          %s264 = sand.u32 %s104, 1
          %s265 = smul.addr %s264, 2
          %s266 = scalar_lea.vmem [#allocation10], %s265
          %s267 = smul.u32 2, %s28
          %s269 = ssub.s32 32, 32
          %270 = vsyncadd %s263, %s269
          %s271 = smul.addr %s27, 2
          %s272 = sadd.s32 %s267, %s271
          %s273 = smul.addr %s272, 16
          %s274 = scalar_lea.hbm %s2, %s273
          %s276 = sshll.u32 %s266, 4
          %s277 = int_to_ptr.vmem [resolvable:$true] %s276
          %279 = dma.hbm_to_vmem [thread:$0]  %s274, 32, %s277, %s263
        $region28: #{tpu_custom_call.1} parent=19 // pred_fallthru
          _
        // Predicated region
        $region29: #{tpu_custom_call.1} parent=19 // pred_check
          %p280 = pneg %p142
        $region30: #{tpu_custom_call.1} parent=19 // pred_check_branch
          %282 = sbr.rel (%p280) target = $region32
        $region31: #{tpu_custom_call.1} parent=19 // pred_region
          %s283 = sand.u32 %s132, 1
          %s284 = scalar_lea.sflag [#allocation12], %s283
          %s285 = sand.u32 %s132, 1
          %s286 = smul.addr %s285, 256
          %s287 = scalar_lea.vmem [#allocation11], %s286
          %s288 = smul.u32 32, %s28
          %s290 = ssub.s32 4096, 4096
          %291 = vsyncadd %s284, %s290
          %s292 = smul.addr %s288, 2
          %s293 = smul.addr %s27, 64
          %s294 = sadd.s32 %s292, %s293
          %s295 = smul.addr %s294, 64
          %s296 = scalar_lea.hbm %s3, %s295
          %s297 = sshll.u32 %s287, 4
          %s298 = int_to_ptr.vmem [resolvable:$true] %s297
          %303 = dma.hbm_to_vmem [thread:$0]  %s296, 4096, %s298, %s284, 128, 128, 8
        $region32: #{tpu_custom_call.1} parent=19 // pred_fallthru
          _
        // Predicated region
        $region33: #{tpu_custom_call.1} parent=19 // pred_check
          %p304 = pneg %p168
        $region34: #{tpu_custom_call.1} parent=19 // pred_check_branch
          %306 = sbr.rel (%p304) target = $region36
        $region35: #{tpu_custom_call.1} parent=19 // pred_region
          %p307 = scmp.lt.s32.totalorder %s27, 1
          %s308 = scalar_select %p307, %s27, 1
          %s309 = smul.addr %s308, 2
          %s310 = scalar_lea.vmem %s4, %s309
        $region36: #{tpu_custom_call.1} parent=19 // pred_fallthru
          _
      $region20: #{tpu_custom_call.1} parent=5 // pred_fallthru
        _
      %p311 = scmp.le.s32.totalorder 1, %s19
      %p312 = scmp.lt.s32.totalorder %s19, 3
      %p313 = pnand %p311, %p312
      %p314 = pneg %p313
      // Predicated region
      $region37: #{tpu_custom_call.1} parent=5 // pred_check
        _
      $region38: #{tpu_custom_call.1} parent=5 // pred_check_branch
        %316 = sbr.rel (%p313) target = $region40
      $region39: #{tpu_custom_call.1} parent=5 // pred_region
        %s317 = ssub.s32 %s19, 1
        // Predicated region
        $region41: #{tpu_custom_call.1} parent=39 // pred_check
          %p318 = pneg %p64
        $region42: #{tpu_custom_call.1} parent=39 // pred_check_branch
          %320 = sbr.rel (%p318) target = $region44
        $region43: #{tpu_custom_call.1} parent=39 // pred_region
          %321 = dma.done [#allocation6], 256
        $region44: #{tpu_custom_call.1} parent=39 // pred_fallthru
          _
        %s322 = sand.u32 %s24, 1
        %s323 = scalar_lea.sflag [#allocation9], %s322
        %s324 = sand.u32 %s79, 1
        %s325 = smul.addr %s324, 256
        %s326 = scalar_lea.vmem [#allocation8], %s325
        // Predicated region
        $region45: #{tpu_custom_call.1} parent=39 // pred_check
          %p327 = pneg %p92
        $region46: #{tpu_custom_call.1} parent=39 // pred_check_branch
          %329 = sbr.rel (%p327) target = $region48
        $region47: #{tpu_custom_call.1} parent=39 // pred_region
          %330 = dma.done %s323, 4096
        $region48: #{tpu_custom_call.1} parent=39 // pred_fallthru
          _
        %s331 = sand.u32 %s24, 1
        %s332 = scalar_lea.sflag [#allocation9], %s331
        %s333 = sand.u32 %s107, 1
        %s334 = smul.addr %s333, 2
        %s335 = scalar_lea.vmem [#allocation10], %s334
        // Predicated region
        $region49: #{tpu_custom_call.1} parent=39 // pred_check
          %p336 = pneg %p120
        $region50: #{tpu_custom_call.1} parent=39 // pred_check_branch
          %338 = sbr.rel (%p336) target = $region52
        $region51: #{tpu_custom_call.1} parent=39 // pred_region
          %339 = dma.done %s332, 32
        $region52: #{tpu_custom_call.1} parent=39 // pred_fallthru
          _
        %s340 = sand.u32 %s135, 1
        %s341 = scalar_lea.sflag [#allocation12], %s340
        %s342 = sand.u32 %s135, 1
        %s343 = smul.addr %s342, 256
        %s344 = scalar_lea.vmem [#allocation11], %s343
        // Predicated region
        $region53: #{tpu_custom_call.1} parent=39 // pred_check
          %p345 = pneg %p148
        $region54: #{tpu_custom_call.1} parent=39 // pred_check_branch
          %347 = sbr.rel (%p345) target = $region56
        $region55: #{tpu_custom_call.1} parent=39 // pred_region
          %348 = dma.done %s341, 4096
        $region56: #{tpu_custom_call.1} parent=39 // pred_fallthru
          _
        %p349 = pneg %p64
        %p350 = pneg %p61
        %s351 = sand.u32 %s24, 1
        %s352 = scalar_lea.sflag [#allocation9], %s351
        %s353 = sand.u32 %s79, 1
        %s354 = smul.addr %s353, 256
        %s355 = scalar_lea.vmem [#allocation8], %s354
        %p356 = pneg %p92
        %p357 = pneg %p89
        %s358 = sand.u32 %s24, 1
        %s359 = scalar_lea.sflag [#allocation9], %s358
        %s360 = sand.u32 %s107, 1
        %s361 = smul.addr %s360, 2
        %s362 = scalar_lea.vmem [#allocation10], %s361
        %p363 = pneg %p120
        %p364 = pneg %p117
        %s365 = sand.u32 %s135, 1
        %s366 = scalar_lea.sflag [#allocation12], %s365
        %s367 = sand.u32 %s135, 1
        %s368 = smul.addr %s367, 256
        %s369 = scalar_lea.vmem [#allocation11], %s368
        %p370 = pneg %p148
        %p371 = pneg %p145
        %p372 = scmp.lt.s32.totalorder %s30, 1
        %s373 = scalar_select %p372, %s30, 1
        %s374 = smul.addr %s373, 2
        %s375 = scalar_lea.vmem %s4, %s374
        %p376 = pneg %p174
        %p377 = pneg %p171
        %p378 = pneg %p200
        %p379 = pneg %p197
        %s380 = smul.u32 2, %s29
        %s381 = smul.u32 2, %s31
        %s382 = smul.u32 32, %s31
        %p383 = scmp.lt.s32.totalorder %s30, 1
        %s384 = scalar_select %p383, %s30, 1
        %s385 = smul.addr %s384, 2
        %s386 = scalar_lea.vmem %s4, %s385
        %s387 = smul.u32 2, %s29
        %p388 = scmp.eq.s32.totalorder %s30, 0
        %p389 = scmp.eq.s32.totalorder %s31, 0
        %p390 = pnand %p388, %p389
        %p391 = pneg %p390
        // Predicated region
        $region57: #{tpu_custom_call.1} parent=39 // pred_check
          _
        $region58: #{tpu_custom_call.1} parent=39 // pred_check_branch
          %393 = sbr.rel (%p390) target = $region60
        $region59: #{tpu_custom_call.1} parent=39 // pred_region
          %v394 = vld [vmem:[#allocation5] sm:$0xff]
          %v395 = vld [vmem:[#allocation5 + $0x8] sm:$0xff]
          %v396 = vunpack.c.l.bf16 %v394
          %v397 = vunpack.c.h.bf16 %v394
          %v398 = vunpack.c.l.bf16 %v395
          %v399 = vunpack.c.h.bf16 %v395
          %400 = vst [vmem:[#allocation2] sm:$0xff] %v396
          %401 = vst [vmem:[#allocation2 + $0x8] sm:$0xff] %v397
          %402 = vst [vmem:[#allocation2 + $0x10] sm:$0xff] %v398
          %403 = vst [vmem:[#allocation2 + $0x18] sm:$0xff] %v399
        $region60: #{tpu_custom_call.1} parent=39 // pred_fallthru
          _
        // Predicated region
        $region61: #{tpu_custom_call.1} parent=39 // pred_check
          %p404 = pneg %p389
        $region62: #{tpu_custom_call.1} parent=39 // pred_check_branch
          %406 = sbr.rel (%p404) target = $region64
        $region63: #{tpu_custom_call.1} parent=39 // pred_region
          %v407 = vld [vmem:[#allocation2] sm:$0xff]
          %v408 = vld [vmem:[#allocation2 + $0x8] sm:$0xff]
          %v409 = vld [vmem:[#allocation2 + $0x10] sm:$0xff]
          %v410 = vld [vmem:[#allocation2 + $0x18] sm:$0xff]
          %v411 = vpack.c.bf16 %v409, %v407
          %v412 = vpack.c.bf16 %v410, %v408
          %v415 = vunpack.c.l.b16 %v411
          %v416 = vunpack.c.l.b16 %v412
          %v417 = vunpack.c.h.b16 %v411
          %v418 = vunpack.c.h.b16 %v412
          %v419 = vpack.c.b16 %v416, %v415
          %v420 = vpack.c.b16 %v418, %v417
          %423 = vst [vmem:[#allocation3] sm:$0xff] %v419
          %424 = vst [vmem:[#allocation3 + $0x8] sm:$0xff] %v420
        $region64: #{tpu_custom_call.1} parent=39 // pred_fallthru
          _
        %v425 = vld [vmem:[#allocation3] sm:$0xff]
        %v426 = vld [vmem:[#allocation3 + $0x8] sm:$0xff]
        %v427 = vld [vmem:[%s326] sm:$0xff]
        %v428 = vld [vmem:[%s326 + $0x8] sm:$0xff]
        %v429 = vld [vmem:[%s326 + $0x10] sm:$0xff]
        %v430 = vld [vmem:[%s326 + $0x18] sm:$0xff]
        %v431 = vld [vmem:[%s326 + $0x20] sm:$0xff]
        %v432 = vld [vmem:[%s326 + $0x28] sm:$0xff]
        %v433 = vld [vmem:[%s326 + $0x30] sm:$0xff]
        %v434 = vld [vmem:[%s326 + $0x38] sm:$0xff]
        %v435 = vld [vmem:[%s326 + $0x40] sm:$0xff]
        %v436 = vld [vmem:[%s326 + $0x48] sm:$0xff]
        %v437 = vld [vmem:[%s326 + $0x50] sm:$0xff]
        %v438 = vld [vmem:[%s326 + $0x58] sm:$0xff]
        %v439 = vld [vmem:[%s326 + $0x60] sm:$0xff]
        %v440 = vld [vmem:[%s326 + $0x68] sm:$0xff]
        %v441 = vld [vmem:[%s326 + $0x70] sm:$0xff]
        %v442 = vld [vmem:[%s326 + $0x78] sm:$0xff]
        %v443 = vld [vmem:[%s326 + $0x80] sm:$0xff]
        %v444 = vld [vmem:[%s326 + $0x88] sm:$0xff]
        %v445 = vld [vmem:[%s326 + $0x90] sm:$0xff]
        %v446 = vld [vmem:[%s326 + $0x98] sm:$0xff]
        %v447 = vld [vmem:[%s326 + $0xa0] sm:$0xff]
        %v448 = vld [vmem:[%s326 + $0xa8] sm:$0xff]
        %v449 = vld [vmem:[%s326 + $0xb0] sm:$0xff]
        %v450 = vld [vmem:[%s326 + $0xb8] sm:$0xff]
        %v451 = vld [vmem:[%s326 + $0xc0] sm:$0xff]
        %v452 = vld [vmem:[%s326 + $0xc8] sm:$0xff]
        %v453 = vld [vmem:[%s326 + $0xd0] sm:$0xff]
        %v454 = vld [vmem:[%s326 + $0xd8] sm:$0xff]
        %v455 = vld [vmem:[%s326 + $0xe0] sm:$0xff]
        %v456 = vld [vmem:[%s326 + $0xe8] sm:$0xff]
        %v457 = vld [vmem:[%s326 + $0xf0] sm:$0xff]
        %v458 = vld [vmem:[%s326 + $0xf8] sm:$0xff]
        %v459 = vld [vmem:[%s335] sm:$0x3]
        %v461 = vlaneseq
        %v462 = vshrl.u32 %v461, 7
        %v463 = vsub.s32 0, %v462
        %v464 = vrot.slane %v459, %v463
        %v465 = vlaneseq
        %v466 = vshrl.u32 %v465, 7
        %v467 = vsub.s32 1, %v466
        %v468 = vrot.slane %v459, %v467
        %v473 = vunpack.c.l.b16 %v425
        %v474 = vunpack.c.h.b16 %v425
        %v475 = vunpack.c.l.b16 %v426
        %v476 = vunpack.c.h.b16 %v426
        %v477 = vpack.c.b16 %v475, %v473
        %v478 = vpack.c.b16 %v476, %v474
        %v513 = vunpack.c.l.b16 %v427
        %v514 = vunpack.c.h.b16 %v427
        %v515 = vunpack.c.l.b16 %v428
        %v516 = vunpack.c.h.b16 %v428
        %v517 = vunpack.c.l.b16 %v429
        %v518 = vunpack.c.h.b16 %v429
        %v519 = vunpack.c.l.b16 %v430
        %v520 = vunpack.c.h.b16 %v430
        %v521 = vunpack.c.l.b16 %v431
        %v522 = vunpack.c.h.b16 %v431
        %v523 = vunpack.c.l.b16 %v432
        %v524 = vunpack.c.h.b16 %v432
        %v525 = vunpack.c.l.b16 %v433
        %v526 = vunpack.c.h.b16 %v433
        %v527 = vunpack.c.l.b16 %v434
        %v528 = vunpack.c.h.b16 %v434
        %v529 = vunpack.c.l.b16 %v435
        %v530 = vunpack.c.h.b16 %v435
        %v531 = vunpack.c.l.b16 %v436
        %v532 = vunpack.c.h.b16 %v436
        %v533 = vunpack.c.l.b16 %v437
        %v534 = vunpack.c.h.b16 %v437
        %v535 = vunpack.c.l.b16 %v438
        %v536 = vunpack.c.h.b16 %v438
        %v537 = vunpack.c.l.b16 %v439
        %v538 = vunpack.c.h.b16 %v439
        %v539 = vunpack.c.l.b16 %v440
        %v540 = vunpack.c.h.b16 %v440
        %v541 = vunpack.c.l.b16 %v441
        %v542 = vunpack.c.h.b16 %v441
        %v543 = vunpack.c.l.b16 %v442
        %v544 = vunpack.c.h.b16 %v442
        %v545 = vunpack.c.l.b16 %v443
        %v546 = vunpack.c.h.b16 %v443
        %v547 = vunpack.c.l.b16 %v444
        %v548 = vunpack.c.h.b16 %v444
        %v549 = vunpack.c.l.b16 %v445
        %v550 = vunpack.c.h.b16 %v445
        %v551 = vunpack.c.l.b16 %v446
        %v552 = vunpack.c.h.b16 %v446
        %v553 = vunpack.c.l.b16 %v447
        %v554 = vunpack.c.h.b16 %v447
        %v555 = vunpack.c.l.b16 %v448
        %v556 = vunpack.c.h.b16 %v448
        %v557 = vunpack.c.l.b16 %v449
        %v558 = vunpack.c.h.b16 %v449
        %v559 = vunpack.c.l.b16 %v450
        %v560 = vunpack.c.h.b16 %v450
        %v561 = vunpack.c.l.b16 %v451
        %v562 = vunpack.c.h.b16 %v451
        %v563 = vunpack.c.l.b16 %v452
        %v564 = vunpack.c.h.b16 %v452
        %v565 = vunpack.c.l.b16 %v453
        %v566 = vunpack.c.h.b16 %v453
        %v567 = vunpack.c.l.b16 %v454
        %v568 = vunpack.c.h.b16 %v454
        %v569 = vunpack.c.l.b16 %v455
        %v570 = vunpack.c.h.b16 %v455
        %v571 = vunpack.c.l.b16 %v456
        %v572 = vunpack.c.h.b16 %v456
        %v573 = vunpack.c.l.b16 %v457
        %v574 = vunpack.c.h.b16 %v457
        %v575 = vunpack.c.l.b16 %v458
        %v576 = vunpack.c.h.b16 %v458
        %v577 = vpack.c.b16 %v515, %v513
        %v578 = vpack.c.b16 %v516, %v514
        %v579 = vpack.c.b16 %v519, %v517
        %v580 = vpack.c.b16 %v520, %v518
        %v581 = vpack.c.b16 %v523, %v521
        %v582 = vpack.c.b16 %v524, %v522
        %v583 = vpack.c.b16 %v527, %v525
        %v584 = vpack.c.b16 %v528, %v526
        %v585 = vpack.c.b16 %v531, %v529
        %v586 = vpack.c.b16 %v532, %v530
        %v587 = vpack.c.b16 %v535, %v533
        %v588 = vpack.c.b16 %v536, %v534
        %v589 = vpack.c.b16 %v539, %v537
        %v590 = vpack.c.b16 %v540, %v538
        %v591 = vpack.c.b16 %v543, %v541
        %v592 = vpack.c.b16 %v544, %v542
        %v593 = vpack.c.b16 %v547, %v545
        %v594 = vpack.c.b16 %v548, %v546
        %v595 = vpack.c.b16 %v551, %v549
        %v596 = vpack.c.b16 %v552, %v550
        %v597 = vpack.c.b16 %v555, %v553
        %v598 = vpack.c.b16 %v556, %v554
        %v599 = vpack.c.b16 %v559, %v557
        %v600 = vpack.c.b16 %v560, %v558
        %v601 = vpack.c.b16 %v563, %v561
        %v602 = vpack.c.b16 %v564, %v562
        %v603 = vpack.c.b16 %v567, %v565
        %v604 = vpack.c.b16 %v568, %v566
        %v605 = vpack.c.b16 %v571, %v569
        %v606 = vpack.c.b16 %v572, %v570
        %v607 = vpack.c.b16 %v575, %v573
        %v608 = vpack.c.b16 %v576, %v574
        %641 = vmatprep.subr.bf16.mxu0 %v592
        %642 = vmatpush1.bf16.msra.mxu0 %v591
        %643 = vmatprep.subr.bf16.mxu0 %v590
        %644 = vmatpush1.bf16.msra.mxu0 %v589
        %645 = vmatprep.subr.bf16.mxu0 %v588
        %646 = vmatpush1.bf16.msra.mxu0 %v587
        %647 = vmatprep.subr.bf16.mxu0 %v586
        %648 = vmatpush1.bf16.msra.mxu0 %v585
        %649 = vmatprep.subr.bf16.mxu0 %v584
        %650 = vmatpush1.bf16.msra.mxu0 %v583
        %651 = vmatprep.subr.bf16.mxu0 %v582
        %652 = vmatpush1.bf16.msra.mxu0 %v581
        %653 = vmatprep.subr.bf16.mxu0 %v580
        %654 = vmatpush1.bf16.msra.mxu0 %v579
        %655 = vmatprep.subr.bf16.mxu0 %v578
        %656 = vmatpush1.bf16.msra.mxu0 %v577
        %657 = vmatprep.subr.bf16.mxu0 %v608
        %658 = vmatpush2.bf16.msra.mxu0 %v607
        %659 = vmatprep.subr.bf16.mxu0 %v606
        %660 = vmatpush2.bf16.msra.mxu0 %v605
        %661 = vmatprep.subr.bf16.mxu0 %v604
        %662 = vmatpush2.bf16.msra.mxu0 %v603
        %663 = vmatprep.subr.bf16.mxu0 %v602
        %664 = vmatpush2.bf16.msra.mxu0 %v601
        %665 = vmatprep.subr.bf16.mxu0 %v600
        %666 = vmatpush2.bf16.msra.mxu0 %v599
        %667 = vmatprep.subr.bf16.mxu0 %v598
        %668 = vmatpush2.bf16.msra.mxu0 %v597
        %669 = vmatprep.subr.bf16.mxu0 %v596
        %670 = vmatpush2.bf16.msra.mxu0 %v595
        %671 = vmatprep.subr.bf16.mxu0 %v594
        %672 = vmatpush2.bf16.msra.mxu0 %v593
        %673 = vmatprep.mubr.bf16.mxu0 %v478
        %674 = vmatmul.mubr.bf16.gmra.mxu0 %v477
        %v675 = vpop.f32.mrf.mxu0
        %v676 = vadd.f32 %v464, %v675
        %v677 = vpop.f32.mrf.mxu0
        %v678 = vadd.f32 %v468, %v677
        %v679 = vpop.f32.mrf.mxu0
        %v680 = vadd.f32 %v464, %v679
        %v681 = vpop.f32.mrf.mxu0
        %v682 = vadd.f32 %v468, %v681
        %683 = vdwg.mxu0
        %v684 = vmul.f32 %v676, 0.5
        %v685 = vmul.f32 %v678, 0.5
        %v686 = vmul.f32 %v680, 0.5
        %v687 = vmul.f32 %v682, 0.5
        %v688 = vmul.f32 %v676, 0.70710677
        %v689 = vmul.f32 %v678, 0.70710677
        %v690 = vmul.f32 %v680, 0.70710677
        %v691 = vmul.f32 %v682, 0.70710677
        %v692 = verf.f32.pop %v688
        %v693 = verf.f32.pop %v689
        %v694 = verf.f32.pop %v690
        %v695 = verf.f32.pop %v691
        %v696 = vadd.f32 %v692, 1.0
        %v697 = vadd.f32 %v693, 1.0
        %v698 = vadd.f32 %v694, 1.0
        %v699 = vadd.f32 %v695, 1.0
        %v700 = vmul.f32 %v684, %v696
        %v701 = vmul.f32 %v685, %v697
        %v702 = vmul.f32 %v686, %v698
        %v703 = vmul.f32 %v687, %v699
        %v704 = vpack.c.bf16 %v702, %v700
        %v705 = vpack.c.bf16 %v703, %v701
        %v706 = vld [vmem:[%s344] sm:$0xff]
        %v707 = vld [vmem:[%s344 + $0x8] sm:$0xff]
        %v708 = vld [vmem:[%s344 + $0x10] sm:$0xff]
        %v709 = vld [vmem:[%s344 + $0x18] sm:$0xff]
        %v710 = vld [vmem:[%s344 + $0x20] sm:$0xff]
        %v711 = vld [vmem:[%s344 + $0x28] sm:$0xff]
        %v712 = vld [vmem:[%s344 + $0x30] sm:$0xff]
        %v713 = vld [vmem:[%s344 + $0x38] sm:$0xff]
        %v714 = vld [vmem:[%s344 + $0x40] sm:$0xff]
        %v715 = vld [vmem:[%s344 + $0x48] sm:$0xff]
        %v716 = vld [vmem:[%s344 + $0x50] sm:$0xff]
        %v717 = vld [vmem:[%s344 + $0x58] sm:$0xff]
        %v718 = vld [vmem:[%s344 + $0x60] sm:$0xff]
        %v719 = vld [vmem:[%s344 + $0x68] sm:$0xff]
        %v720 = vld [vmem:[%s344 + $0x70] sm:$0xff]
        %v721 = vld [vmem:[%s344 + $0x78] sm:$0xff]
        %v722 = vld [vmem:[%s344 + $0x80] sm:$0xff]
        %v723 = vld [vmem:[%s344 + $0x88] sm:$0xff]
        %v724 = vld [vmem:[%s344 + $0x90] sm:$0xff]
        %v725 = vld [vmem:[%s344 + $0x98] sm:$0xff]
        %v726 = vld [vmem:[%s344 + $0xa0] sm:$0xff]
        %v727 = vld [vmem:[%s344 + $0xa8] sm:$0xff]
        %v728 = vld [vmem:[%s344 + $0xb0] sm:$0xff]
        %v729 = vld [vmem:[%s344 + $0xb8] sm:$0xff]
        %v730 = vld [vmem:[%s344 + $0xc0] sm:$0xff]
        %v731 = vld [vmem:[%s344 + $0xc8] sm:$0xff]
        %v732 = vld [vmem:[%s344 + $0xd0] sm:$0xff]
        %v733 = vld [vmem:[%s344 + $0xd8] sm:$0xff]
        %v734 = vld [vmem:[%s344 + $0xe0] sm:$0xff]
        %v735 = vld [vmem:[%s344 + $0xe8] sm:$0xff]
        %v736 = vld [vmem:[%s344 + $0xf0] sm:$0xff]
        %v737 = vld [vmem:[%s344 + $0xf8] sm:$0xff]
        %v770 = vunpack.c.l.b16 %v706
        %v771 = vunpack.c.h.b16 %v706
        %v772 = vunpack.c.l.b16 %v707
        %v773 = vunpack.c.h.b16 %v707
        %v774 = vunpack.c.l.b16 %v708
        %v775 = vunpack.c.h.b16 %v708
        %v776 = vunpack.c.l.b16 %v709
        %v777 = vunpack.c.h.b16 %v709
        %v778 = vunpack.c.l.b16 %v710
        %v779 = vunpack.c.h.b16 %v710
        %v780 = vunpack.c.l.b16 %v711
        %v781 = vunpack.c.h.b16 %v711
        %v782 = vunpack.c.l.b16 %v712
        %v783 = vunpack.c.h.b16 %v712
        %v784 = vunpack.c.l.b16 %v713
        %v785 = vunpack.c.h.b16 %v713
        %v786 = vunpack.c.l.b16 %v714
        %v787 = vunpack.c.h.b16 %v714
        %v788 = vunpack.c.l.b16 %v715
        %v789 = vunpack.c.h.b16 %v715
        %v790 = vunpack.c.l.b16 %v716
        %v791 = vunpack.c.h.b16 %v716
        %v792 = vunpack.c.l.b16 %v717
        %v793 = vunpack.c.h.b16 %v717
        %v794 = vunpack.c.l.b16 %v718
        %v795 = vunpack.c.h.b16 %v718
        %v796 = vunpack.c.l.b16 %v719
        %v797 = vunpack.c.h.b16 %v719
        %v798 = vunpack.c.l.b16 %v720
        %v799 = vunpack.c.h.b16 %v720
        %v800 = vunpack.c.l.b16 %v721
        %v801 = vunpack.c.h.b16 %v721
        %v802 = vunpack.c.l.b16 %v722
        %v803 = vunpack.c.h.b16 %v722
        %v804 = vunpack.c.l.b16 %v723
        %v805 = vunpack.c.h.b16 %v723
        %v806 = vunpack.c.l.b16 %v724
        %v807 = vunpack.c.h.b16 %v724
        %v808 = vunpack.c.l.b16 %v725
        %v809 = vunpack.c.h.b16 %v725
        %v810 = vunpack.c.l.b16 %v726
        %v811 = vunpack.c.h.b16 %v726
        %v812 = vunpack.c.l.b16 %v727
        %v813 = vunpack.c.h.b16 %v727
        %v814 = vunpack.c.l.b16 %v728
        %v815 = vunpack.c.h.b16 %v728
        %v816 = vunpack.c.l.b16 %v729
        %v817 = vunpack.c.h.b16 %v729
        %v818 = vunpack.c.l.b16 %v730
        %v819 = vunpack.c.h.b16 %v730
        %v820 = vunpack.c.l.b16 %v731
        %v821 = vunpack.c.h.b16 %v731
        %v822 = vunpack.c.l.b16 %v732
        %v823 = vunpack.c.h.b16 %v732
        %v824 = vunpack.c.l.b16 %v733
        %v825 = vunpack.c.h.b16 %v733
        %v826 = vunpack.c.l.b16 %v734
        %v827 = vunpack.c.h.b16 %v734
        %v828 = vunpack.c.l.b16 %v735
        %v829 = vunpack.c.h.b16 %v735
        %v830 = vunpack.c.l.b16 %v736
        %v831 = vunpack.c.h.b16 %v736
        %v832 = vunpack.c.l.b16 %v737
        %v833 = vunpack.c.h.b16 %v737
        %v834 = vpack.c.b16 %v772, %v770
        %v835 = vpack.c.b16 %v773, %v771
        %v836 = vpack.c.b16 %v776, %v774
        %v837 = vpack.c.b16 %v777, %v775
        %v838 = vpack.c.b16 %v780, %v778
        %v839 = vpack.c.b16 %v781, %v779
        %v840 = vpack.c.b16 %v784, %v782
        %v841 = vpack.c.b16 %v785, %v783
        %v842 = vpack.c.b16 %v788, %v786
        %v843 = vpack.c.b16 %v789, %v787
        %v844 = vpack.c.b16 %v792, %v790
        %v845 = vpack.c.b16 %v793, %v791
        %v846 = vpack.c.b16 %v796, %v794
        %v847 = vpack.c.b16 %v797, %v795
        %v848 = vpack.c.b16 %v800, %v798
        %v849 = vpack.c.b16 %v801, %v799
        %v850 = vpack.c.b16 %v804, %v802
        %v851 = vpack.c.b16 %v805, %v803
        %v852 = vpack.c.b16 %v808, %v806
        %v853 = vpack.c.b16 %v809, %v807
        %v854 = vpack.c.b16 %v812, %v810
        %v855 = vpack.c.b16 %v813, %v811
        %v856 = vpack.c.b16 %v816, %v814
        %v857 = vpack.c.b16 %v817, %v815
        %v858 = vpack.c.b16 %v820, %v818
        %v859 = vpack.c.b16 %v821, %v819
        %v860 = vpack.c.b16 %v824, %v822
        %v861 = vpack.c.b16 %v825, %v823
        %v862 = vpack.c.b16 %v828, %v826
        %v863 = vpack.c.b16 %v829, %v827
        %v864 = vpack.c.b16 %v832, %v830
        %v865 = vpack.c.b16 %v833, %v831
        %898 = vmatprep.subr.bf16.mxu0 %v849
        %899 = vmatpush1.bf16.msra.mxu0 %v848
        %900 = vmatprep.subr.bf16.mxu0 %v847
        %901 = vmatpush1.bf16.msra.mxu0 %v846
        %902 = vmatprep.subr.bf16.mxu0 %v845
        %903 = vmatpush1.bf16.msra.mxu0 %v844
        %904 = vmatprep.subr.bf16.mxu0 %v843
        %905 = vmatpush1.bf16.msra.mxu0 %v842
        %906 = vmatprep.subr.bf16.mxu0 %v841
        %907 = vmatpush1.bf16.msra.mxu0 %v840
        %908 = vmatprep.subr.bf16.mxu0 %v839
        %909 = vmatpush1.bf16.msra.mxu0 %v838
        %910 = vmatprep.subr.bf16.mxu0 %v837
        %911 = vmatpush1.bf16.msra.mxu0 %v836
        %912 = vmatprep.subr.bf16.mxu0 %v835
        %913 = vmatpush1.bf16.msra.mxu0 %v834
        %914 = vmatprep.subr.bf16.mxu0 %v865
        %915 = vmatpush2.bf16.msra.mxu0 %v864
        %916 = vmatprep.subr.bf16.mxu0 %v863
        %917 = vmatpush2.bf16.msra.mxu0 %v862
        %918 = vmatprep.subr.bf16.mxu0 %v861
        %919 = vmatpush2.bf16.msra.mxu0 %v860
        %920 = vmatprep.subr.bf16.mxu0 %v859
        %921 = vmatpush2.bf16.msra.mxu0 %v858
        %922 = vmatprep.subr.bf16.mxu0 %v857
        %923 = vmatpush2.bf16.msra.mxu0 %v856
        %924 = vmatprep.subr.bf16.mxu0 %v855
        %925 = vmatpush2.bf16.msra.mxu0 %v854
        %926 = vmatprep.subr.bf16.mxu0 %v853
        %927 = vmatpush2.bf16.msra.mxu0 %v852
        %928 = vmatprep.subr.bf16.mxu0 %v851
        %929 = vmatpush2.bf16.msra.mxu0 %v850
        %930 = vmatprep.mubr.bf16.mxu0 %v705
        %931 = vmatmul.mubr.bf16.gmra.mxu0 %v704
        %v932 = vpop.f32.mrf.mxu0
        %v933 = vadd.f32 0.0, %v932
        %v934 = vpop.f32.mrf.mxu0
        %v935 = vadd.f32 0.0, %v934
        %v936 = vpop.f32.mrf.mxu0
        %v937 = vadd.f32 0.0, %v936
        %v938 = vpop.f32.mrf.mxu0
        %v939 = vadd.f32 0.0, %v938
        %940 = vdwg.mxu0
        // Predicated region
        $region65: #{tpu_custom_call.1} parent=39 // pred_check
          %p941 = pneg %p389
        $region66: #{tpu_custom_call.1} parent=39 // pred_check_branch
          %943 = sbr.rel (%p941) target = $region68
        $region67: #{tpu_custom_call.1} parent=39 // pred_region
          %944 = vst [vmem:[#allocation4] sm:$0xff] %v933
          %945 = vst [vmem:[#allocation4 + $0x8] sm:$0xff] %v935
          %946 = vst [vmem:[#allocation4 + $0x10] sm:$0xff] %v937
          %947 = vst [vmem:[#allocation4 + $0x18] sm:$0xff] %v939
        $region68: #{tpu_custom_call.1} parent=39 // pred_fallthru
          _
        %p948 = scmp.gt.s32.totalorder %s31, 0
        // Predicated region
        $region69: #{tpu_custom_call.1} parent=39 // pred_check
          %p949 = pneg %p948
        $region70: #{tpu_custom_call.1} parent=39 // pred_check_branch
          %951 = sbr.rel (%p949) target = $region72
        $region71: #{tpu_custom_call.1} parent=39 // pred_region
          %v952 = vld [vmem:[#allocation4] sm:$0xff]
          %v953 = vld [vmem:[#allocation4 + $0x8] sm:$0xff]
          %v954 = vld [vmem:[#allocation4 + $0x10] sm:$0xff]
          %v955 = vld [vmem:[#allocation4 + $0x18] sm:$0xff]
          %v956 = vadd.f32 %v952, %v933
          %v957 = vadd.f32 %v953, %v935
          %v958 = vadd.f32 %v954, %v937
          %v959 = vadd.f32 %v955, %v939
          %960 = vst [vmem:[#allocation4] sm:$0xff] %v956
          %961 = vst [vmem:[#allocation4 + $0x8] sm:$0xff] %v957
          %962 = vst [vmem:[#allocation4 + $0x10] sm:$0xff] %v958
          %963 = vst [vmem:[#allocation4 + $0x18] sm:$0xff] %v959
        $region72: #{tpu_custom_call.1} parent=39 // pred_fallthru
          _
        // Predicated region
        $region73: #{tpu_custom_call.1} parent=39 // pred_check
          %p964 = pneg %p389
        $region74: #{tpu_custom_call.1} parent=39 // pred_check_branch
          %966 = sbr.rel (%p964) target = $region76
        $region75: #{tpu_custom_call.1} parent=39 // pred_region
          %v967 = vld [vmem:[#allocation2] sm:$0xff]
          %v968 = vld [vmem:[#allocation2 + $0x8] sm:$0xff]
          %v969 = vld [vmem:[#allocation2 + $0x10] sm:$0xff]
          %v970 = vld [vmem:[#allocation2 + $0x18] sm:$0xff]
          %v971 = vld [vmem:[#allocation4] sm:$0xff]
          %v972 = vld [vmem:[#allocation4 + $0x8] sm:$0xff]
          %v973 = vld [vmem:[#allocation4 + $0x10] sm:$0xff]
          %v974 = vld [vmem:[#allocation4 + $0x18] sm:$0xff]
          %v975 = vadd.f32 %v967, %v971
          %v976 = vadd.f32 %v968, %v972
          %v977 = vadd.f32 %v969, %v973
          %v978 = vadd.f32 %v970, %v974
          %v979 = vld [vmem:[%s386] sm:$0x3]
          %v981 = vlaneseq
          %v982 = vshrl.u32 %v981, 7
          %v983 = vsub.s32 0, %v982
          %v984 = vrot.slane %v979, %v983
          %v985 = vlaneseq
          %v986 = vshrl.u32 %v985, 7
          %v987 = vsub.s32 1, %v986
          %v988 = vrot.slane %v979, %v987
          %v991 = vadd.f32 %v975, %v984
          %v992 = vadd.f32 %v976, %v988
          %v993 = vadd.f32 %v977, %v984
          %v994 = vadd.f32 %v978, %v988
          %995 = vst [vmem:[#allocation2] sm:$0xff] %v991
          %996 = vst [vmem:[#allocation2 + $0x8] sm:$0xff] %v992
          %997 = vst [vmem:[#allocation2 + $0x10] sm:$0xff] %v993
          %998 = vst [vmem:[#allocation2 + $0x18] sm:$0xff] %v994
        $region76: #{tpu_custom_call.1} parent=39 // pred_fallthru
          _
        %p999 = scmp.eq.s32.totalorder %s30, 1
        %p1000 = pnand %p999, %p389
        %p1001 = pneg %p1000
        // Predicated region
        $region77: #{tpu_custom_call.1} parent=39 // pred_check
          _
        $region78: #{tpu_custom_call.1} parent=39 // pred_check_branch
          %1003 = sbr.rel (%p1000) target = $region80
        $region79: #{tpu_custom_call.1} parent=39 // pred_region
          %v1004 = vld [vmem:[#allocation2] sm:$0xff]
          %v1005 = vld [vmem:[#allocation2 + $0x8] sm:$0xff]
          %v1006 = vld [vmem:[#allocation2 + $0x10] sm:$0xff]
          %v1007 = vld [vmem:[#allocation2 + $0x18] sm:$0xff]
          %v1008 = vpack.c.bf16 %v1006, %v1004
          %v1009 = vpack.c.bf16 %v1007, %v1005
          %v1012 = vunpack.c.l.b16 %v1008
          %v1013 = vunpack.c.l.b16 %v1009
          %v1014 = vunpack.c.h.b16 %v1008
          %v1015 = vunpack.c.h.b16 %v1009
          %v1016 = vpack.c.b16 %v1013, %v1012
          %v1017 = vpack.c.b16 %v1015, %v1014
          %1020 = vst [vmem:[#allocation13] sm:$0xff] %v1016
          %1021 = vst [vmem:[#allocation13 + $0x8] sm:$0xff] %v1017
        $region80: #{tpu_custom_call.1} parent=39 // pred_fallthru
          _
        // Predicated region
        $region81: #{tpu_custom_call.1} parent=39 // pred_check
          %p1022 = pneg %p197
        $region82: #{tpu_custom_call.1} parent=39 // pred_check_branch
          %1024 = sbr.rel (%p1022) target = $region84
        $region83: #{tpu_custom_call.1} parent=39 // pred_region
          %s1025 = smul.u32 2, %s29
          %s1027 = ssub.s32 256, 256
          %1028 = vsyncadd [#allocation7], %s1027
          %s1029 = smul.addr %s1025, 2
          %s1030 = smul.addr %s1029, 64
          %s1031 = scalar_lea.hbm %s5, %s1030
          %s1032 = sshll.u32 [#allocation13], 4
          %s1033 = int_to_ptr.vmem [resolvable:$true] %s1032
          %1038 = dma.vmem_to_hbm [thread:$0]  %s1033, 256, %s1031, [#allocation7], 128, 128, 8
        $region84: #{tpu_custom_call.1} parent=39 // pred_fallthru
          _
        // Predicated region
        $region85: #{tpu_custom_call.1} parent=39 // pred_check
          %p1039 = pneg %p197
        $region86: #{tpu_custom_call.1} parent=39 // pred_check_branch
          %1041 = sbr.rel (%p1039) target = $region88
        $region87: #{tpu_custom_call.1} parent=39 // pred_region
          %1042 = dma.done [#allocation7], 256
        $region88: #{tpu_custom_call.1} parent=39 // pred_fallthru
          _
      $region40: #{tpu_custom_call.1} parent=5 // pred_fallthru
        _
      %p1043 = scmp.le.s32.totalorder 2, %s19
      // Predicated region
      $region89: #{tpu_custom_call.1} parent=5 // pred_check
        %p1044 = pneg %p1043
      $region90: #{tpu_custom_call.1} parent=5 // pred_check_branch
        %1046 = sbr.rel (%p1044) target = $region92
      $region91: #{tpu_custom_call.1} parent=5 // pred_region
        %s1047 = ssub.s32 %s19, 2
      $region92: #{tpu_custom_call.1} parent=5 // pred_fallthru
        _
    $region6: #{tpu_custom_call.1} parent=1 // loop_footer
      %s23 = sadd.s32 1, %s19
    $region7: #{tpu_custom_call.1} parent=1 // loop_footer_branch
      %18 = sbr.rel target = $region3
    $region8: #{tpu_custom_call.1} parent=1 // loop_exit
      _
    %1048 = vsyncpa [#allocation6], 1
    %s1049 = scalar_lea.sflag [#allocation6], 1
    %1050 = vsyncpa %s1049, 1
    %1051 = vsyncpa [#allocation9], 1
    %s1052 = scalar_lea.sflag [#allocation9], 1
    %1053 = vsyncpa %s1052, 1
    %1054 = vsyncpa [#allocation12], 1
    %s1055 = scalar_lea.sflag [#allocation12], 1
    %1056 = vsyncpa %s1055, 1
    %1057 = vsyncpa [#allocation7], 1
    %s1058 = scalar_lea.sflag [#allocation7], 1
    %1059 = vsyncpa %s1058, 1

</llo_original>
